<compile_context>
chip_gen: v7x
topology: tpu7x:2x2x1
jax: 0.10.0
libtpu: 0.0.40
codegen_flags: <defaults>
</compile_context>

<pallas_src>
import functools

import jax
import jax.numpy as jnp
from jax.experimental import pallas as pl
from jax.experimental.pallas import tpu as pltpu


def _softplus(v):
    # numerically-stable log(1 + exp(v)), identical to F.softplus
    return jnp.maximum(v, 0.0) + jnp.log1p(jnp.exp(-jnp.abs(v)))


def s6_kernel(x_ref, w_ref, b_ref, o_ref, *, d_model, n_pad):
    """One row tile: fused bf16 projection + softplus + B·C epilogue."""
    xt = x_ref[...]                                               # (TR, D) bf16

    # Single fused projection  xt @ [fc1.W | fc2.W | fc3.W]  ->  (TR, D + 2*Np)
    # bf16 operands -> full-rate MXU; accumulate in f32.  Bias is added after
    # accumulation, so keeping it f32 costs nothing and is slightly more exact.
    p = jnp.dot(xt, w_ref[...], preferred_element_type=jnp.float32)
    p = p + b_ref[...]

    D, Np = d_model, n_pad
    delta = _softplus(p[:, :D])                                   # (TR, D)
    Bs = p[:, D:D + Np]                                           # (TR, Np)
    Cs = p[:, D + Np:D + 2 * Np]                                  # (TR, Np)

    # y = x * delta * sum_n(C*B)   (A eliminated: it only multiplies h == 0;
    # zero-padded lane columns of B/C also contribute exactly 0 here)
    cb = jnp.sum(Bs * Cs, axis=-1, keepdims=True)                 # (TR, 1)
    o_ref[...] = (xt.astype(jnp.float32) * delta * cb).astype(o_ref.dtype)


def _vmem_limit_bytes():
    """Per-generation VMEM budget: physical capacity minus headroom.
    v5e/v6e (128 MiB) -> ~96 MiB; v7x (64 MiB) -> ~48 MiB."""
    try:
        cap = pltpu.get_tpu_info().vmem_capacity_bytes
    except Exception:
        cap = 64 << 20                               # conservative fallback
    return int(min(96 << 20, max(32 << 20, cap - (16 << 20))))


def _row_tile(rows, per_row_buffer_bytes, resident_bytes, vmem_limit):
    """Rows per grid step: as big as the VMEM budget allows (512-1024 row tiles
    reach ~85% of HBM roofline vs ~63% at 256), a multiple of 8 sublanes,
    capped at 1024, with a best-effort even step count for v7x's 2 TCs."""
    budget = max(vmem_limit - resident_bytes - (4 << 20), 1 << 20)
    tr = budget // max(per_row_buffer_bytes, 1)
    tr = max(8, min(1024, (tr // 8) * 8))
    rows8 = ((rows + 7) // 8) * 8
    tr = min(tr, rows8)
    steps = -(-rows // tr)
    if steps > 1 and steps % 2 == 1:                 # v7x megacore balance
        tr_alt = max(8, ((-(-rows // (steps + 1)) + 7) // 8) * 8)
        if (-(-rows // tr_alt)) % 2 == 0:
            tr = tr_alt
    return tr


def s6_forward(x, params):
    B, L, D = x.shape
    N = params["w2"].shape[1]
    out_dtype = x.dtype

    # Lane-align the fc2/fc3 column slabs to 128 for real model sizes so the
    # B/C slices start on vreg-lane boundaries; zero columns add 0 to sum(B*C).
    # Skipped for toy D < 128 where padding would dominate the GEMM.
    n_pad = ((N + 127) // 128) * 128 if D >= 128 else N

    def pad_cols(a):
        return a if n_pad == N else jnp.pad(a, ((0, 0), (0, n_pad - N)))

    # Fuse the three Linear layers into one lane-wide bf16 matmul.  A is NOT
    # passed to the kernel: it only ever multiplies the zero-initialized h.
    w_fused = jnp.concatenate(
        [params["w1"], pad_cols(params["w2"]), pad_cols(params["w3"])],
        axis=1).astype(jnp.bfloat16)
    b_fused = jnp.concatenate(
        [params["b1"], pad_cols(params["b2"]), pad_cols(params["b3"])],
        axis=1).astype(jnp.float32)
    fused_cols = D + 2 * n_pad

    rows = B * L
    x2 = x.reshape(rows, D)
    if x2.dtype != jnp.bfloat16:
        x2 = x2.astype(jnp.bfloat16)     # bf16 MXU operand; halves x DMA bytes
    # No host-side row padding: Pallas masks the ragged last block and does not
    # write out-of-bounds output rows back (no cross-row mixing in the math).

    vmem_limit = _vmem_limit_bytes()
    out_isz = jnp.dtype(out_dtype).itemsize
    per_row = 2 * (2 * D) + 2 * (out_isz * D)        # double-buffered x + out tiles
    resident = 2 * D * fused_cols + 4 * fused_cols   # single-buffered weight + bias
    tr = _row_tile(rows, per_row, resident, vmem_limit)
    grid = (pl.cdiv(rows, tr),)

    flops = 2 * rows * D * fused_cols + 10 * rows * (D + n_pad)
    transcendentals = 2 * rows * D                   # exp + log1p per softplus elem
    bytes_accessed = (2 * x2.size + 2 * w_fused.size + 4 * b_fused.size
                      + out_isz * rows * D)

    def run(single_buffer_invariants):
        inv_kw = ({"pipeline_mode": pl.Buffered(1)}
                  if single_buffer_invariants else {})
        return pl.pallas_call(
            functools.partial(s6_kernel, d_model=D, n_pad=n_pad),
            out_shape=jax.ShapeDtypeStruct((rows, D), out_dtype),
            grid=grid,
            in_specs=[
                pl.BlockSpec((tr, D), lambda i: (i, 0)),          # row tile of x
                # grid-invariant fused weight / bias: single-buffered
                pl.BlockSpec((D, fused_cols), lambda i: (0, 0), **inv_kw),
                pl.BlockSpec((1, fused_cols), lambda i: (0, 0), **inv_kw),
            ],
            out_specs=pl.BlockSpec((tr, D), lambda i: (i, 0)),
            compiler_params=pltpu.CompilerParams(
                dimension_semantics=("parallel",),
                vmem_limit_bytes=vmem_limit,
            ),
            cost_estimate=pl.CostEstimate(
                flops=flops,
                transcendentals=transcendentals,
                bytes_accessed=bytes_accessed,
            ),
        )(x2, w_fused, b_fused)

    try:
        out = run(True)
    except Exception:
        # Fallback for jax versions without BlockSpec pipeline_mode support;
        # semantics are identical, only the weight's VMEM reservation doubles.
        out = run(False)

    return out.reshape(B, L, D)


def make_params(key, d_model, state_size):
    ks = jax.random.split(key, 7)
    r = lambda k, shape: 0.2 * jax.random.normal(k, shape, jnp.float32)
    return {
        "w1": r(ks[0], (d_model, d_model)), "b1": r(ks[1], (1, d_model)),        # fc1
        "w2": r(ks[2], (d_model, state_size)), "b2": r(ks[3], (1, state_size)),  # fc2
        "w3": r(ks[4], (d_model, state_size)), "b3": r(ks[5], (1, state_size)),  # fc3
        "A":  r(ks[6], (d_model, state_size)),   # kept for module fidelity; multiplies h==0
    }


def ref_forward(x, p):
    """Pure-JAX f32 reference following the PyTorch S6.forward op-for-op."""
    Bs = jnp.einsum("bld,dn->bln", x, p["w2"]) + p["b2"][0]
    Cs = jnp.einsum("bld,dn->bln", x, p["w3"]) + p["b3"][0]
    delta = jax.nn.softplus(jnp.einsum("bld,de->ble", x, p["w1"]) + p["b1"][0])
    dB = jnp.einsum("bld,bln->bldn", delta, Bs)
    dA = jnp.exp(jnp.einsum("bld,dn->bldn", delta, p["A"]))
    h = jnp.zeros(dA.shape, jnp.float32)
    h = dA * h + x[..., None] * dB
    return jnp.einsum("bln,bldn->bld", Cs, h)


def ref_forward_matched(x, p):
    """Plain-JAX replica of the kernel's exact numerics (bf16 MXU operands,
    f32 accumulation) — validates the Pallas plumbing tightly."""
    B, L, D = x.shape
    N = p["w2"].shape[1]
    xb = x.reshape(-1, D).astype(jnp.bfloat16)
    w = jnp.concatenate([p["w1"], p["w2"], p["w3"]], axis=1).astype(jnp.bfloat16)
    b = jnp.concatenate([p["b1"], p["b2"], p["b3"]], axis=1).astype(jnp.float32)
    proj = jnp.dot(xb, w, preferred_element_type=jnp.float32) + b
    delta = _softplus(proj[:, :D])
    cb = jnp.sum(proj[:, D:D + N] * proj[:, D + N:D + 2 * N], axis=-1, keepdims=True)
    y = xb.astype(jnp.float32) * delta * cb
    return y.astype(x.dtype).reshape(B, L, D)


if __name__ == "__main__":
    batch, seq_len, d_model, state_size = 2, 8, 16, 8
    key = jax.random.PRNGKey(0)
    kx, kp = jax.random.split(key)
    x = jax.random.normal(kx, (batch, seq_len, d_model), jnp.float32)
    params = make_params(kp, d_model, state_size)

    out = jax.block_until_ready(s6_forward(x, params))
    assert out.shape == (batch, seq_len, d_model)
    assert out.dtype == x.dtype

    # Tight check vs. a plain-JAX replica of the kernel's bf16/f32 numerics.
    ref_m = ref_forward_matched(x, params)
    err_m = float(jnp.max(jnp.abs(out - ref_m)))
    assert jnp.allclose(out, ref_m, atol=5e-3, rtol=5e-3), f"matched-ref max err {err_m}"

    # Looser sanity check vs. the full-f32 op-for-op reference (bf16 operands
    # on the MXU bound the deviation).
    ref = ref_forward(x, params)
    err = float(jnp.max(jnp.abs(out - ref)))
    assert jnp.allclose(out, ref, atol=2e-1, rtol=1e-1), f"f32-ref max err {err}"

    print("KERNEL_OK")
</pallas_src>

<mosaic_0001>
module attributes {stable_mosaic.version = 11 : i64} {
  func.func @s6_kernel(%arg0: i32, %arg1: memref<16x16xbf16, #tpu.memory_space<vmem>>, %arg2: memref<16x32xbf16, #tpu.memory_space<vmem>>, %arg3: memref<1x32xf32, #tpu.memory_space<vmem>>, %arg4: memref<16x16xf32, #tpu.memory_space<vmem>>) attributes {dimension_semantics = [#tpu.dimension_semantics<parallel>], iteration_bounds = array<i64: 1>, scalar_prefetch = 0 : i64, scratch_operands = 0 : i64, tpu.core_type = #tpu.core_type<tc>, window_params = [{transform_indices = @transform_0, window_bounds = array<i64: 16, 16>}, {pipeline_mode = #tpu.pipeline_mode<synchronous>, transform_indices = @transform_1, window_bounds = array<i64: 16, 32>}, {pipeline_mode = #tpu.pipeline_mode<synchronous>, transform_indices = @transform_2, window_bounds = array<i64: 1, 32>}, {transform_indices = @transform_3, window_bounds = array<i64: 16, 16>}]} {
    %c0 = arith.constant 0 : index
    %c0_0 = arith.constant 0 : index
    %0 = vector.load %arg1[%c0, %c0_0] : memref<16x16xbf16, #tpu.memory_space<vmem>>, vector<16x16xbf16>
    %c0_1 = arith.constant 0 : index
    %c0_2 = arith.constant 0 : index
    %1 = vector.load %arg2[%c0_1, %c0_2] : memref<16x32xbf16, #tpu.memory_space<vmem>>, vector<16x32xbf16>
    %cst = arith.constant dense<0.000000e+00> : vector<16x32xf32>
    %2 = tpu.matmul %0, %1, %cst {dimension_numbers = #tpu.dot_dimension_numbers<[1], [0], [0], [1], [0, 0, 1, 1], [], []>} : vector<16x16xbf16>, vector<16x32xbf16>, vector<16x32xf32> -> vector<16x32xf32>
    %c0_3 = arith.constant 0 : index
    %c0_4 = arith.constant 0 : index
    %3 = vector.load %arg3[%c0_3, %c0_4] : memref<1x32xf32, #tpu.memory_space<vmem>>, vector<1x32xf32>
    %4 = vector.broadcast %3 : vector<1x32xf32> to vector<16x32xf32>
    %5 = arith.addf %2, %4 : vector<16x32xf32>
    %6 = vector.extract_strided_slice %5 {offsets = [0, 0], sizes = [16, 16], strides = [1, 1]} : vector<16x32xf32> to vector<16x16xf32>
    %cst_5 = arith.constant 0.000000e+00 : f32
    %7 = vector.broadcast %cst_5 : f32 to vector<16x16xf32>
    %8 = arith.maximumf %6, %7 : vector<16x16xf32>
    %9 = math.absf %6 : vector<16x16xf32>
    %cst_6 = arith.constant 0.000000e+00 : f32
    %10 = vector.broadcast %cst_6 : f32 to vector<16x16xf32>
    %11 = arith.subf %10, %9 : vector<16x16xf32>
    %12 = math.exp %11 : vector<16x16xf32>
    %13 = math.log1p %12 : vector<16x16xf32>
    %14 = arith.addf %8, %13 : vector<16x16xf32>
    %15 = vector.extract_strided_slice %5 {offsets = [0, 16], sizes = [16, 8], strides = [1, 1]} : vector<16x32xf32> to vector<16x8xf32>
    %16 = vector.extract_strided_slice %5 {offsets = [0, 24], sizes = [16, 8], strides = [1, 1]} : vector<16x32xf32> to vector<16x8xf32>
    %17 = arith.mulf %15, %16 : vector<16x8xf32>
    %cst_7 = arith.constant dense<0.000000e+00> : vector<16xf32>
    %18 = vector.multi_reduction <add>, %17, %cst_7 [1] : vector<16x8xf32> to vector<16xf32>
    %19 = vector.shape_cast %18 : vector<16xf32> to vector<16x1xf32>
    %20 = arith.extf %0 : vector<16x16xbf16> to vector<16x16xf32>
    %21 = arith.mulf %20, %14 : vector<16x16xf32>
    %22 = vector.broadcast %19 : vector<16x1xf32> to vector<16x16xf32>
    %23 = arith.mulf %21, %22 : vector<16x16xf32>
    %c0_8 = arith.constant 0 : index
    %c0_9 = arith.constant 0 : index
    %24 = vector.load %arg4[%c0_8, %c0_9] : memref<16x16xf32, #tpu.memory_space<vmem>>, vector<16x16xf32>
    tpu.vector_store %arg4[%c0_8, %c0_9], %23 {strides = array<i32>} : memref<16x16xf32, #tpu.memory_space<vmem>>, vector<16x16xf32>,
    return
  }
  func.func @transform_0(%arg0: i32) -> (i32, i32) {
    %c0_i32 = arith.constant 0 : i32
    %c0_i32_0 = arith.constant 0 : i32
    return %arg0, %c0_i32 : i32, i32
  }
  func.func @transform_1(%arg0: i32) -> (i32, i32) {
    %c0_i32 = arith.constant 0 : i32
    %c0_i32_0 = arith.constant 0 : i32
    %c0_i32_1 = arith.constant 0 : i32
    return %c0_i32, %c0_i32_0 : i32, i32
  }
  func.func @transform_2(%arg0: i32) -> (i32, i32) {
    %c0_i32 = arith.constant 0 : i32
    %c0_i32_0 = arith.constant 0 : i32
    %c0_i32_1 = arith.constant 0 : i32
    return %c0_i32, %c0_i32_0 : i32, i32
  }
  func.func @transform_3(%arg0: i32) -> (i32, i32) {
    %c0_i32 = arith.constant 0 : i32
    %c0_i32_0 = arith.constant 0 : i32
    return %arg0, %c0_i32 : i32, i32
  }
}

module attributes {stable_mosaic.version = 11 : i64} {
  func.func @s6_kernel(%arg0: i32, %arg1: memref<16x16xbf16, #tpu.memory_space<vmem>>, %arg2: memref<16x32xbf16, #tpu.memory_space<vmem>>, %arg3: memref<1x32xf32, #tpu.memory_space<vmem>>, %arg4: memref<16x16xf32, #tpu.memory_space<vmem>>) attributes {dimension_semantics = [#tpu.dimension_semantics<parallel>], iteration_bounds = array<i64: 1>, scalar_prefetch = 0 : i64, scratch_operands = 0 : i64, tpu.core_type = #tpu.core_type<tc>, window_params = [{transform_indices = @transform_0, window_bounds = array<i64: 16, 16>}, {pipeline_mode = #tpu.pipeline_mode<synchronous>, transform_indices = @transform_1, window_bounds = array<i64: 16, 32>}, {pipeline_mode = #tpu.pipeline_mode<synchronous>, transform_indices = @transform_2, window_bounds = array<i64: 1, 32>}, {transform_indices = @transform_3, window_bounds = array<i64: 16, 16>}]} {
    %c0 = arith.constant 0 : index
    %c0_0 = arith.constant 0 : index
    %0 = vector.load %arg1[%c0, %c0_0] : memref<16x16xbf16, #tpu.memory_space<vmem>>, vector<16x16xbf16>
    %c0_1 = arith.constant 0 : index
    %c0_2 = arith.constant 0 : index
    %1 = vector.load %arg2[%c0_1, %c0_2] : memref<16x32xbf16, #tpu.memory_space<vmem>>, vector<16x32xbf16>
    %cst = arith.constant dense<0.000000e+00> : vector<16x32xf32>
    %2 = tpu.matmul %0, %1, %cst {dimension_numbers = #tpu.dot_dimension_numbers<[1], [0], [0], [1], [0, 0, 1, 1], [], []>} : vector<16x16xbf16>, vector<16x32xbf16>, vector<16x32xf32> -> vector<16x32xf32>
    %c0_3 = arith.constant 0 : index
    %c0_4 = arith.constant 0 : index
    %3 = vector.load %arg3[%c0_3, %c0_4] : memref<1x32xf32, #tpu.memory_space<vmem>>, vector<1x32xf32>
    %4 = vector.broadcast %3 : vector<1x32xf32> to vector<16x32xf32>
    %5 = arith.addf %2, %4 : vector<16x32xf32>
    %6 = vector.extract_strided_slice %5 {offsets = [0, 0], sizes = [16, 16], strides = [1, 1]} : vector<16x32xf32> to vector<16x16xf32>
    %cst_5 = arith.constant 0.000000e+00 : f32
    %7 = vector.broadcast %cst_5 : f32 to vector<16x16xf32>
    %8 = arith.maximumf %6, %7 : vector<16x16xf32>
    %9 = math.absf %6 : vector<16x16xf32>
    %cst_6 = arith.constant 0.000000e+00 : f32
    %10 = vector.broadcast %cst_6 : f32 to vector<16x16xf32>
    %11 = arith.subf %10, %9 : vector<16x16xf32>
    %12 = math.exp %11 : vector<16x16xf32>
    %13 = math.log1p %12 : vector<16x16xf32>
    %14 = arith.addf %8, %13 : vector<16x16xf32>
    %15 = vector.extract_strided_slice %5 {offsets = [0, 16], sizes = [16, 8], strides = [1, 1]} : vector<16x32xf32> to vector<16x8xf32>
    %16 = vector.extract_strided_slice %5 {offsets = [0, 24], sizes = [16, 8], strides = [1, 1]} : vector<16x32xf32> to vector<16x8xf32>
    %17 = arith.mulf %15, %16 : vector<16x8xf32>
    %cst_7 = arith.constant dense<0.000000e+00> : vector<16xf32>
    %18 = vector.multi_reduction <add>, %17, %cst_7 [1] : vector<16x8xf32> to vector<16xf32>
    %19 = vector.shape_cast %18 : vector<16xf32> to vector<16x1xf32>
    %20 = arith.extf %0 : vector<16x16xbf16> to vector<16x16xf32>
    %21 = arith.mulf %20, %14 : vector<16x16xf32>
    %22 = vector.broadcast %19 : vector<16x1xf32> to vector<16x16xf32>
    %23 = arith.mulf %21, %22 : vector<16x16xf32>
    %c0_8 = arith.constant 0 : index
    %c0_9 = arith.constant 0 : index
    %24 = vector.load %arg4[%c0_8, %c0_9] : memref<16x16xf32, #tpu.memory_space<vmem>>, vector<16x16xf32>
    tpu.vector_store %arg4[%c0_8, %c0_9], %23 {strides = array<i32>} : memref<16x16xf32, #tpu.memory_space<vmem>>, vector<16x16xf32>,
    return
  }
  func.func @transform_0(%arg0: i32) -> (i32, i32) {
    %c0_i32 = arith.constant 0 : i32
    %c0_i32_0 = arith.constant 0 : i32
    return %arg0, %c0_i32 : i32, i32
  }
  func.func @transform_1(%arg0: i32) -> (i32, i32) {
    %c0_i32 = arith.constant 0 : i32
    %c0_i32_0 = arith.constant 0 : i32
    %c0_i32_1 = arith.constant 0 : i32
    return %c0_i32, %c0_i32_0 : i32, i32
  }
  func.func @transform_2(%arg0: i32) -> (i32, i32) {
    %c0_i32 = arith.constant 0 : i32
    %c0_i32_0 = arith.constant 0 : i32
    %c0_i32_1 = arith.constant 0 : i32
    return %c0_i32, %c0_i32_0 : i32, i32
  }
  func.func @transform_3(%arg0: i32) -> (i32, i32) {
    %c0_i32 = arith.constant 0 : i32
    %c0_i32_0 = arith.constant 0 : i32
    return %arg0, %c0_i32 : i32, i32
  }
}

</mosaic_0001>

<llo_original>
// kernel: tpu_custom_call.1
$region0: #{tpu_custom_call.1}
  #allocation0 [shape = 'u32[]', space=smem, size = 0x4, offset = 0x4, fixed_abs, tag = 'smem constant byte address 0x4 - core index']
  #allocation1 [shape = 'u32[144,128]{1,0:T(1,128)}', space=vmem, size = 0x12000, scoped, tag = 'internal scratch']
  %s0 = inlined_call_operand.hbm [shape: bf16[16,16], index: 0, kind: input, shape index: {}]
  %s1 = inlined_call_operand.hbm [shape: bf16[16,32], index: 1, kind: input, shape index: {}]
  %s2 = inlined_call_operand.vmem [shape: f32[1,32], index: 2, kind: input, shape index: {}]
  %s3 = inlined_call_operand.hbm [shape: f32[16,16], index: 3, kind: output, shape index: {}]
  %s4 = sld [smem:[#allocation0]]
  $region30: #{tpu_custom_call.1} parent=0
    _
  %s6 = ssub.s32 1, %s4
  %s7 = scalar_select 0, %s6, %s4
  $region1: #{tpu_custom_call.1} parent=0
    #allocation2 [shape = 'u8[4096]{0}', space=vmem, size = 0x1000, scoped, tag = 'input window, operand 0, single buffered']
    #allocation3 [shape = 's32[1]{0}', space=sflag, size = 0x4, scoped, tag = 'scoped memory for tpu_custom_call.1']
    #allocation4 [shape = 's32[1]{0}', space=sflag, size = 0x4, scoped, tag = 'scoped memory for tpu_custom_call.1']
    #allocation5 [shape = 'u8[4096]{0}', space=vmem, size = 0x1000, scoped, tag = 'input window, operand 1, single buffered']
    #allocation6 [shape = 's32[1]{0}', space=sflag, size = 0x4, scoped, tag = 'scoped memory for tpu_custom_call.1']
    #allocation7 [shape = 'u8[8192]{0}', space=vmem, size = 0x2000, scoped, tag = 'output window, operand 0, single buffered']
    %8 = vsyncpa [#allocation3], 0
    %9 = vsyncpa [#allocation6], 0
    %10 = vsyncpa [#allocation4], 0
    // Predicated region
    $region2: #{tpu_custom_call.1} parent=1 // pred_check
      _
    $region3: #{tpu_custom_call.1} parent=1 // pred_check_branch
      %12 = sbr.rel (0) target = $region5
    $region4: #{tpu_custom_call.1} parent=1 // pred_region
      %s14 = ssub.s32 128, 128
      %15 = vsyncadd [#allocation3], %s14
      %s16 = sshll.u32 [#allocation2], 4
      %s17 = int_to_ptr.vmem [resolvable:$true] %s16
      %22 = dma.hbm_to_vmem [thread:$0]  %s0, 128, %s17, [#allocation3], 64, 64, 4
    $region5: #{tpu_custom_call.1} parent=1 // pred_fallthru
      _
    // Predicated region
    $region6: #{tpu_custom_call.1} parent=1 // pred_check
      _
    $region7: #{tpu_custom_call.1} parent=1 // pred_check_branch
      %24 = sbr.rel (0) target = $region9
    $region8: #{tpu_custom_call.1} parent=1 // pred_region
      %s26 = ssub.s32 128, 128
      %27 = vsyncadd [#allocation6], %s26
      %s28 = sshll.u32 [#allocation5], 4
      %s29 = int_to_ptr.vmem [resolvable:$true] %s28
      %34 = dma.hbm_to_vmem [thread:$0]  %s1, 128, %s29, [#allocation6], 64, 64, 4
    $region9: #{tpu_custom_call.1} parent=1 // pred_fallthru
      _
    // Predicated region
    $region10: #{tpu_custom_call.1} parent=1 // pred_check
      _
    $region11: #{tpu_custom_call.1} parent=1 // pred_check_branch
      %36 = sbr.rel (0) target = $region13
    $region12: #{tpu_custom_call.1} parent=1 // pred_region
      _
    $region13: #{tpu_custom_call.1} parent=1 // pred_fallthru
      _
    // Predicated region
    $region14: #{tpu_custom_call.1} parent=1 // pred_check
      _
    $region15: #{tpu_custom_call.1} parent=1 // pred_check_branch
      %38 = sbr.rel (0) target = $region17
    $region16: #{tpu_custom_call.1} parent=1 // pred_region
      %39 = dma.done [#allocation3], 128
    $region17: #{tpu_custom_call.1} parent=1 // pred_fallthru
      _
    // Predicated region
    $region18: #{tpu_custom_call.1} parent=1 // pred_check
      _
    $region19: #{tpu_custom_call.1} parent=1 // pred_check_branch
      %41 = sbr.rel (0) target = $region21
    $region20: #{tpu_custom_call.1} parent=1 // pred_region
      %42 = dma.done [#allocation6], 128
    $region21: #{tpu_custom_call.1} parent=1 // pred_fallthru
      _
    %v44 = vld [vmem:[#allocation2] sm:$0xf]
    %v45 = vld [vmem:[#allocation2 + $0x4] sm:$0xf]
    %v46 = vld [vmem:[#allocation5] sm:$0xf]
    %v47 = vld [vmem:[#allocation5 + $0x4] sm:$0xf]
    %v48 = vld [vmem:[%s2] sm:$0x1]
    %v50 = vlaneseq
    %v51 = vshrl.u32 %v50, 7
    %v52 = vsub.s32 0, %v51
    %v53 = vrot.slane %v48, %v52
    %v57 = vunpack.c.l.b16 %v44
    %v58 = vunpack.c.l.b16 %v45
    %v59 = vpack.c.b16 %v58, %v57
    %v62 = vunpack.c.l.b16 %v46
    %v63 = vunpack.c.l.b16 %v47
    %v64 = vpack.c.b16 %v63, %v62
    %vm66 = vcmask 130048
    %v68 = vsel %vm66, %v59, 0
    %70 = vmatprep.subr.bf16.mxu0 0
    %71 = vmatpush1.bf16.msra.mxu0 %v64
    %72 = vmatprep.subr.bf16.mxu0 0
    %73 = vmatpush1.bf16.msra.mxu0 0
    %74 = vmatprep.subr.bf16.mxu0 0
    %75 = vmatpush1.bf16.msra.mxu0 0
    %76 = vmatprep.subr.bf16.mxu0 0
    %77 = vmatpush1.bf16.msra.mxu0 0
    %78 = vmatprep.subr.bf16.mxu0 0
    %79 = vmatpush1.bf16.msra.mxu0 0
    %80 = vmatprep.subr.bf16.mxu0 0
    %81 = vmatpush1.bf16.msra.mxu0 0
    %82 = vmatprep.subr.bf16.mxu0 0
    %83 = vmatpush1.bf16.msra.mxu0 0
    %84 = vmatprep.subr.bf16.mxu0 0
    %85 = vmatpush1.bf16.msra.mxu0 0
    %86 = vmatprep.subr.bf16.mxu0 0
    %87 = vmatpush1.bf16.msra.mxu0 0
    %88 = vmatprep.subr.bf16.mxu0 0
    %89 = vmatpush1.bf16.msra.mxu0 0
    %90 = vmatprep.subr.bf16.mxu0 0
    %91 = vmatpush1.bf16.msra.mxu0 0
    %92 = vmatprep.subr.bf16.mxu0 0
    %93 = vmatpush1.bf16.msra.mxu0 0
    %94 = vmatprep.subr.bf16.mxu0 0
    %95 = vmatpush1.bf16.msra.mxu0 0
    %96 = vmatprep.subr.bf16.mxu0 0
    %97 = vmatpush1.bf16.msra.mxu0 0
    %98 = vmatprep.subr.bf16.mxu0 0
    %99 = vmatpush1.bf16.msra.mxu0 0
    %100 = vmatprep.subr.bf16.mxu0 0
    %101 = vmatpush1.bf16.msra.mxu0 0
    %102 = vmatprep.mubr.bf16.mxu0 0
    %103 = vmatmul.mubr.bf16.gmra.mrb[0].mxu0 %v68
    %v104 = vpop.f32.mrb[0].mxu0
    %v105 = vadd.f32 %v53, %v104
    %v106 = vpop.f32.mrb[0].mxu0
    %v107 = vpop.f32.mrb[0].mxu0
    %v108 = vadd.f32 %v53, %v107
    %v109 = vpop.f32.mrb[0].mxu0
    %110 = vdwg.mxu0
    %v111 = vmax.f32 %v105, 0.0
    %v112 = vmax.f32 %v108, 0.0
    %v113 = vand.u32 2147483647, %v105
    %v114 = vand.u32 2147483647, %v108
    %v115 = vsub.f32 0.0, %v113
    %v116 = vsub.f32 0.0, %v114
    %v117 = vmul.f32 %v115, 1.442695
    %v118 = vpow.pop %v117
    %v119 = vmul.f32 %v116, 1.442695
    %v120 = vpow.pop %v119
    %v121 = vadd.f32 %v118, 1.0
    %v122 = vlog2.pop %v121
    %v123 = vmul.f32 %v122, 0.6931472
    %v124 = vmul.f32 -0.5, %v118
    %v125 = vadd.f32 %v124, 1.0
    %v126 = vmul.f32 %v125, %v118
    %v127 = vand.u32 2147483647, %v118
    %vm128 = vcmp.lt.f32.partialorder %v127, 0.0004427343
    %v129 = vsel %vm128, %v126, %v123
    %v130 = vadd.f32 %v120, 1.0
    %v131 = vlog2.pop %v130
    %v132 = vmul.f32 %v131, 0.6931472
    %v133 = vmul.f32 -0.5, %v120
    %v134 = vadd.f32 %v133, 1.0
    %v135 = vmul.f32 %v134, %v120
    %v136 = vand.u32 2147483647, %v120
    %vm137 = vcmp.lt.f32.partialorder %v136, 0.0004427343
    %v138 = vsel %vm137, %v135, %v132
    %v139 = vadd.f32 %v111, %v129
    %v140 = vadd.f32 %v112, %v138
    %143 = vrot.lane.b32.xlu0 %v105, 120
    %v144 = vpop.permute.xlu0 %143
    %145 = vrot.lane.b32.xlu0 %v108, 120
    %v146 = vpop.permute.xlu0 %145
    %v149 = vmul.f32 %v105, %v144
    %v150 = vmul.f32 %v108, %v146
    %153 = vrot.lane.b32.xlu0 %v149, 112
    %v154 = vpop.permute.xlu0 %153
    %155 = vrot.lane.b32.xlu0 %v150, 112
    %v156 = vpop.permute.xlu0 %155
    %vm159 = vcmask 64512
    %v160 = vsel %vm159, %v154, 0.0
    %161 = vadd.xlane.f32.xlu0 %v160
    %v162 = vpop.xlane.xlu0 %161
    %v163 = vsel %vm159, %v156, 0.0
    %164 = vadd.xlane.f32.xlu0 %v163
    %v165 = vpop.xlane.xlu0 %164
    %v166 = vunpack.c.l.bf16 %v44
    %v167 = vunpack.c.l.bf16 %v45
    %v168 = vmul.f32 %v166, %v139
    %v169 = vmul.f32 %v167, %v140
    %v170 = vmul.f32 %v168, %v162
    %v171 = vmul.f32 %v169, %v165
    %172 = vst.msk [vmem:[#allocation7] sm:$0xff] %vm66, %v170
    %173 = vst.msk [vmem:[#allocation7 + $0x8] sm:$0xff] %vm66, %v171
    // Predicated region
    $region22: #{tpu_custom_call.1} parent=1 // pred_check
      _
    $region23: #{tpu_custom_call.1} parent=1 // pred_check_branch
      %175 = sbr.rel (0) target = $region25
    $region24: #{tpu_custom_call.1} parent=1 // pred_region
      %s177 = ssub.s32 256, 256
      %178 = vsyncadd [#allocation4], %s177
      %s179 = sshll.u32 [#allocation7], 4
      %s180 = int_to_ptr.vmem [resolvable:$true] %s179
      %185 = dma.vmem_to_hbm [thread:$0]  %s180, 256, %s3, [#allocation4], 128, 128, 8
    $region25: #{tpu_custom_call.1} parent=1 // pred_fallthru
      _
    // Predicated region
    $region26: #{tpu_custom_call.1} parent=1 // pred_check
      _
    $region27: #{tpu_custom_call.1} parent=1 // pred_check_branch
      %187 = sbr.rel (0) target = $region29
    $region28: #{tpu_custom_call.1} parent=1 // pred_region
      %188 = dma.done [#allocation4], 256
    $region29: #{tpu_custom_call.1} parent=1 // pred_fallthru
      _
    %189 = vsyncpa [#allocation3], 1
    %190 = vsyncpa [#allocation6], 1
    %191 = vsyncpa [#allocation4], 1

// kernel: tpu_custom_call.1
$region0: #{tpu_custom_call.1}
  #allocation0 [shape = 'u32[]', space=smem, size = 0x4, offset = 0x4, fixed_abs, tag = 'smem constant byte address 0x4 - core index']
  #allocation1 [shape = 'u32[144,128]{1,0:T(1,128)}', space=vmem, size = 0x12000, scoped, tag = 'internal scratch']
  %s0 = inlined_call_operand.hbm [shape: bf16[16,16], index: 0, kind: input, shape index: {}]
  %s1 = inlined_call_operand.hbm [shape: bf16[16,32], index: 1, kind: input, shape index: {}]
  %s2 = inlined_call_operand.vmem [shape: f32[1,32], index: 2, kind: input, shape index: {}]
  %s3 = inlined_call_operand.hbm [shape: f32[16,16], index: 3, kind: output, shape index: {}]
  %s4 = sld [smem:[#allocation0]]
  $region30: #{tpu_custom_call.1} parent=0
    _
  %s6 = ssub.s32 1, %s4
  %s7 = scalar_select 0, %s6, %s4
  $region1: #{tpu_custom_call.1} parent=0
    #allocation2 [shape = 'u8[4096]{0}', space=vmem, size = 0x1000, scoped, tag = 'input window, operand 0, single buffered']
    #allocation3 [shape = 's32[1]{0}', space=sflag, size = 0x4, scoped, tag = 'scoped memory for tpu_custom_call.1']
    #allocation4 [shape = 's32[1]{0}', space=sflag, size = 0x4, scoped, tag = 'scoped memory for tpu_custom_call.1']
    #allocation5 [shape = 'u8[4096]{0}', space=vmem, size = 0x1000, scoped, tag = 'input window, operand 1, single buffered']
    #allocation6 [shape = 's32[1]{0}', space=sflag, size = 0x4, scoped, tag = 'scoped memory for tpu_custom_call.1']
    #allocation7 [shape = 'u8[8192]{0}', space=vmem, size = 0x2000, scoped, tag = 'output window, operand 0, single buffered']
    %8 = vsyncpa [#allocation3], 0
    %9 = vsyncpa [#allocation6], 0
    %10 = vsyncpa [#allocation4], 0
    // Predicated region
    $region2: #{tpu_custom_call.1} parent=1 // pred_check
      _
    $region3: #{tpu_custom_call.1} parent=1 // pred_check_branch
      %12 = sbr.rel (0) target = $region5
    $region4: #{tpu_custom_call.1} parent=1 // pred_region
      %s14 = ssub.s32 128, 128
      %15 = vsyncadd [#allocation3], %s14
      %s16 = sshll.u32 [#allocation2], 4
      %s17 = int_to_ptr.vmem [resolvable:$true] %s16
      %22 = dma.hbm_to_vmem [thread:$0]  %s0, 128, %s17, [#allocation3], 64, 64, 4
    $region5: #{tpu_custom_call.1} parent=1 // pred_fallthru
      _
    // Predicated region
    $region6: #{tpu_custom_call.1} parent=1 // pred_check
      _
    $region7: #{tpu_custom_call.1} parent=1 // pred_check_branch
      %24 = sbr.rel (0) target = $region9
    $region8: #{tpu_custom_call.1} parent=1 // pred_region
      %s26 = ssub.s32 128, 128
      %27 = vsyncadd [#allocation6], %s26
      %s28 = sshll.u32 [#allocation5], 4
      %s29 = int_to_ptr.vmem [resolvable:$true] %s28
      %34 = dma.hbm_to_vmem [thread:$0]  %s1, 128, %s29, [#allocation6], 64, 64, 4
    $region9: #{tpu_custom_call.1} parent=1 // pred_fallthru
      _
    // Predicated region
    $region10: #{tpu_custom_call.1} parent=1 // pred_check
      _
    $region11: #{tpu_custom_call.1} parent=1 // pred_check_branch
      %36 = sbr.rel (0) target = $region13
    $region12: #{tpu_custom_call.1} parent=1 // pred_region
      _
    $region13: #{tpu_custom_call.1} parent=1 // pred_fallthru
      _
    // Predicated region
    $region14: #{tpu_custom_call.1} parent=1 // pred_check
      _
    $region15: #{tpu_custom_call.1} parent=1 // pred_check_branch
      %38 = sbr.rel (0) target = $region17
    $region16: #{tpu_custom_call.1} parent=1 // pred_region
      %39 = dma.done [#allocation3], 128
    $region17: #{tpu_custom_call.1} parent=1 // pred_fallthru
      _
    // Predicated region
    $region18: #{tpu_custom_call.1} parent=1 // pred_check
      _
    $region19: #{tpu_custom_call.1} parent=1 // pred_check_branch
      %41 = sbr.rel (0) target = $region21
    $region20: #{tpu_custom_call.1} parent=1 // pred_region
      %42 = dma.done [#allocation6], 128
    $region21: #{tpu_custom_call.1} parent=1 // pred_fallthru
      _
    %v44 = vld [vmem:[#allocation2] sm:$0xf]
    %v45 = vld [vmem:[#allocation2 + $0x4] sm:$0xf]
    %v46 = vld [vmem:[#allocation5] sm:$0xf]
    %v47 = vld [vmem:[#allocation5 + $0x4] sm:$0xf]
    %v48 = vld [vmem:[%s2] sm:$0x1]
    %v50 = vlaneseq
    %v51 = vshrl.u32 %v50, 7
    %v52 = vsub.s32 0, %v51
    %v53 = vrot.slane %v48, %v52
    %v57 = vunpack.c.l.b16 %v44
    %v58 = vunpack.c.l.b16 %v45
    %v59 = vpack.c.b16 %v58, %v57
    %v62 = vunpack.c.l.b16 %v46
    %v63 = vunpack.c.l.b16 %v47
    %v64 = vpack.c.b16 %v63, %v62
    %vm66 = vcmask 130048
    %v68 = vsel %vm66, %v59, 0
    %70 = vmatprep.subr.bf16.mxu0 0
    %71 = vmatpush1.bf16.msra.mxu0 %v64
    %72 = vmatprep.subr.bf16.mxu0 0
    %73 = vmatpush1.bf16.msra.mxu0 0
    %74 = vmatprep.subr.bf16.mxu0 0
    %75 = vmatpush1.bf16.msra.mxu0 0
    %76 = vmatprep.subr.bf16.mxu0 0
    %77 = vmatpush1.bf16.msra.mxu0 0
    %78 = vmatprep.subr.bf16.mxu0 0
    %79 = vmatpush1.bf16.msra.mxu0 0
    %80 = vmatprep.subr.bf16.mxu0 0
    %81 = vmatpush1.bf16.msra.mxu0 0
    %82 = vmatprep.subr.bf16.mxu0 0
    %83 = vmatpush1.bf16.msra.mxu0 0
    %84 = vmatprep.subr.bf16.mxu0 0
    %85 = vmatpush1.bf16.msra.mxu0 0
    %86 = vmatprep.subr.bf16.mxu0 0
    %87 = vmatpush1.bf16.msra.mxu0 0
    %88 = vmatprep.subr.bf16.mxu0 0
    %89 = vmatpush1.bf16.msra.mxu0 0
    %90 = vmatprep.subr.bf16.mxu0 0
    %91 = vmatpush1.bf16.msra.mxu0 0
    %92 = vmatprep.subr.bf16.mxu0 0
    %93 = vmatpush1.bf16.msra.mxu0 0
    %94 = vmatprep.subr.bf16.mxu0 0
    %95 = vmatpush1.bf16.msra.mxu0 0
    %96 = vmatprep.subr.bf16.mxu0 0
    %97 = vmatpush1.bf16.msra.mxu0 0
    %98 = vmatprep.subr.bf16.mxu0 0
    %99 = vmatpush1.bf16.msra.mxu0 0
    %100 = vmatprep.subr.bf16.mxu0 0
    %101 = vmatpush1.bf16.msra.mxu0 0
    %102 = vmatprep.mubr.bf16.mxu0 0
    %103 = vmatmul.mubr.bf16.gmra.mrb[0].mxu0 %v68
    %v104 = vpop.f32.mrb[0].mxu0
    %v105 = vadd.f32 %v53, %v104
    %v106 = vpop.f32.mrb[0].mxu0
    %v107 = vpop.f32.mrb[0].mxu0
    %v108 = vadd.f32 %v53, %v107
    %v109 = vpop.f32.mrb[0].mxu0
    %110 = vdwg.mxu0
    %v111 = vmax.f32 %v105, 0.0
    %v112 = vmax.f32 %v108, 0.0
    %v113 = vand.u32 2147483647, %v105
    %v114 = vand.u32 2147483647, %v108
    %v115 = vsub.f32 0.0, %v113
    %v116 = vsub.f32 0.0, %v114
    %v117 = vmul.f32 %v115, 1.442695
    %v118 = vpow.pop %v117
    %v119 = vmul.f32 %v116, 1.442695
    %v120 = vpow.pop %v119
    %v121 = vadd.f32 %v118, 1.0
    %v122 = vlog2.pop %v121
    %v123 = vmul.f32 %v122, 0.6931472
    %v124 = vmul.f32 -0.5, %v118
    %v125 = vadd.f32 %v124, 1.0
    %v126 = vmul.f32 %v125, %v118
    %v127 = vand.u32 2147483647, %v118
    %vm128 = vcmp.lt.f32.partialorder %v127, 0.0004427343
    %v129 = vsel %vm128, %v126, %v123
    %v130 = vadd.f32 %v120, 1.0
    %v131 = vlog2.pop %v130
    %v132 = vmul.f32 %v131, 0.6931472
    %v133 = vmul.f32 -0.5, %v120
    %v134 = vadd.f32 %v133, 1.0
    %v135 = vmul.f32 %v134, %v120
    %v136 = vand.u32 2147483647, %v120
    %vm137 = vcmp.lt.f32.partialorder %v136, 0.0004427343
    %v138 = vsel %vm137, %v135, %v132
    %v139 = vadd.f32 %v111, %v129
    %v140 = vadd.f32 %v112, %v138
    %143 = vrot.lane.b32.xlu0 %v105, 120
    %v144 = vpop.permute.xlu0 %143
    %145 = vrot.lane.b32.xlu0 %v108, 120
    %v146 = vpop.permute.xlu0 %145
    %v149 = vmul.f32 %v105, %v144
    %v150 = vmul.f32 %v108, %v146
    %153 = vrot.lane.b32.xlu0 %v149, 112
    %v154 = vpop.permute.xlu0 %153
    %155 = vrot.lane.b32.xlu0 %v150, 112
    %v156 = vpop.permute.xlu0 %155
    %vm159 = vcmask 64512
    %v160 = vsel %vm159, %v154, 0.0
    %161 = vadd.xlane.f32.xlu0 %v160
    %v162 = vpop.xlane.xlu0 %161
    %v163 = vsel %vm159, %v156, 0.0
    %164 = vadd.xlane.f32.xlu0 %v163
    %v165 = vpop.xlane.xlu0 %164
    %v166 = vunpack.c.l.bf16 %v44
    %v167 = vunpack.c.l.bf16 %v45
    %v168 = vmul.f32 %v166, %v139
    %v169 = vmul.f32 %v167, %v140
    %v170 = vmul.f32 %v168, %v162
    %v171 = vmul.f32 %v169, %v165
    %172 = vst.msk [vmem:[#allocation7] sm:$0xff] %vm66, %v170
    %173 = vst.msk [vmem:[#allocation7 + $0x8] sm:$0xff] %vm66, %v171
    // Predicated region
    $region22: #{tpu_custom_call.1} parent=1 // pred_check
      _
    $region23: #{tpu_custom_call.1} parent=1 // pred_check_branch
      %175 = sbr.rel (0) target = $region25
    $region24: #{tpu_custom_call.1} parent=1 // pred_region
      %s177 = ssub.s32 256, 256
      %178 = vsyncadd [#allocation4], %s177
      %s179 = sshll.u32 [#allocation7], 4
      %s180 = int_to_ptr.vmem [resolvable:$true] %s179
      %185 = dma.vmem_to_hbm [thread:$0]  %s180, 256, %s3, [#allocation4], 128, 128, 8
    $region25: #{tpu_custom_call.1} parent=1 // pred_fallthru
      _
    // Predicated region
    $region26: #{tpu_custom_call.1} parent=1 // pred_check
      _
    $region27: #{tpu_custom_call.1} parent=1 // pred_check_branch
      %187 = sbr.rel (0) target = $region29
    $region28: #{tpu_custom_call.1} parent=1 // pred_region
      %188 = dma.done [#allocation4], 256
    $region29: #{tpu_custom_call.1} parent=1 // pred_fallthru
      _
    %189 = vsyncpa [#allocation3], 1
    %190 = vsyncpa [#allocation6], 1
    %191 = vsyncpa [#allocation4], 1

</llo_original>
